<compile_context>
chip_gen: v5e
topology: v5e:2x2
jax: 0.10.0
libtpu: 0.0.40
codegen_flags: <defaults>
</compile_context>

<pallas_src>
import functools

import numpy as np
import jax
import jax.numpy as jnp
from jax import lax
from jax.experimental import pallas as pl
from jax.experimental.pallas import tpu as pltpu


def _dice_stats_kernel(x_ref, lbl_ref, inter_ref, ssum_ref, tsum_ref, *,
                       s_valid, tile_s, n_classes):
    """x_ref: (1, C, TS) scores; lbl_ref: (1, 1, TS) class labels.

    Accumulates per-class partial statistics for the current batch element:
      inter = sum(score * onehot), ssum = sum(score^2), tsum = sum(onehot).
    (onehot^2 == onehot, so sum(target^2) == sum(onehot).)
    """
    si = pl.program_id(1)

    @pl.when(si == 0)
    def _init():
        inter_ref[...] = jnp.zeros_like(inter_ref)
        ssum_ref[...] = jnp.zeros_like(ssum_ref)
        tsum_ref[...] = jnp.zeros_like(tsum_ref)

    x = x_ref[0].astype(jnp.float32)                 # (C, TS)
    lbl = lbl_ref[0].astype(jnp.float32)             # (1, TS)

    if s_valid % tile_s != 0:
        # Mask the out-of-bounds tail of the final partial tile (garbage-safe:
        # `where` selects, so NaN/Inf garbage never reaches the sums).
        lane = lax.broadcasted_iota(jnp.int32, (1, tile_s), 1)
        valid = si * tile_s + lane < s_valid
        x = jnp.where(valid, x, jnp.float32(0.0))
        lbl = jnp.where(valid, lbl, jnp.float32(-1.0))

    cls = lax.broadcasted_iota(jnp.int32, (n_classes, 1), 0).astype(jnp.float32)
    oh = (lbl == cls).astype(jnp.float32)            # (C, TS) one-hot target

    inter_ref[0] += jnp.sum(x * oh, axis=-1, keepdims=True)   # (C, 1)
    ssum_ref[0] += jnp.sum(x * x, axis=-1, keepdims=True)     # (C, 1)
    tsum_ref[0] += jnp.sum(oh, axis=-1, keepdims=True)        # (C, 1)


def _padded_rows(rows, itemsize):
    """Sublane dim after (8,128)-tile padding for the given element size."""
    pack = max(1, 4 // max(1, itemsize))   # f32 -> 8, bf16 -> 16, i8 -> 32
    mult = 8 * pack
    return -(-rows // mult) * mult


def _pick_tile_s(C, x_itemsize, lbl_itemsize, vmem_budget_bytes, max_tile):
    """Largest lane tile whose double-buffered, *padded* input buffers fit."""
    bytes_per_lane = 2 * (_padded_rows(C, x_itemsize) * x_itemsize +
                          _padded_rows(1, lbl_itemsize) * lbl_itemsize)
    cand = int(vmem_budget_bytes) // max(1, bytes_per_lane)
    cand = max(128, (cand // 128) * 128)
    return min(cand, max_tile)


def dice_loss(inputs, target, n_classes, weight=None, softmax=False,
              tile_s=None, vmem_budget_bytes=16 << 20, max_tile=262144):
    """Pallas DiceLoss.forward: inputs (N,C,D,H,W) scores, target (N,1,D,H,W)."""
    if softmax:
        inputs = jax.nn.softmax(inputs, axis=1)
    if weight is None:
        weight = [1.0] * n_classes

    N, C = int(inputs.shape[0]), int(inputs.shape[1])
    assert C == n_classes, "predict & target shape do not match"
    spatial = inputs.shape[2:]
    S = int(np.prod(spatial))

    # Metadata-only reshapes: keep the native NCDHW memory layout, no transpose
    # and no host-side padding / dtype-cast passes over HBM.
    x = inputs.reshape(N, C, S)
    lbl = target.reshape(N, 1, S)
    if lbl.dtype in (jnp.int64, jnp.uint64):
        lbl = lbl.astype(jnp.int32)
    elif lbl.dtype == jnp.float64:
        lbl = lbl.astype(jnp.float32)

    if tile_s is None:
        tile_s = _pick_tile_s(C, x.dtype.itemsize, lbl.dtype.itemsize,
                              vmem_budget_bytes, max_tile)
    tile_s = int(tile_s)
    if tile_s >= S:
        tile_s = S                     # single full-width block (any S allowed)
        num_s = 1
    else:
        tile_s = max(128, (tile_s // 128) * 128)   # lane-aligned
        num_s = int(pl.cdiv(S, tile_s))

    # Scoped-VMEM limit: exact double-buffered input footprint + headroom,
    # clamped so it is safe on every generation (v5e/v6e 128 MiB, v7x 64 MiB).
    in_buf_bytes = 2 * (
        _padded_rows(C, x.dtype.itemsize) * x.dtype.itemsize +
        _padded_rows(1, lbl.dtype.itemsize) * lbl.dtype.itemsize) * tile_s
    vmem_limit = int(min(max(in_buf_bytes + (2 << 20), 16 << 20), 48 << 20))

    kernel = functools.partial(
        _dice_stats_kernel, s_valid=S, tile_s=tile_s, n_classes=C)

    stat_shape = jax.ShapeDtypeStruct((N, C, 1), jnp.float32)
    stat_spec = pl.BlockSpec((1, C, 1), lambda n, si: (n, 0, 0))

    inter_p, ssum_p, tsum_p = pl.pallas_call(
        kernel,
        out_shape=(stat_shape, stat_shape, stat_shape),
        grid_spec=pltpu.PrefetchScalarGridSpec(
            num_scalar_prefetch=0,
            grid=(N, num_s),
            in_specs=[
                pl.BlockSpec((1, C, tile_s), lambda n, si: (n, 0, si)),
                pl.BlockSpec((1, 1, tile_s), lambda n, si: (n, 0, si)),
            ],
            out_specs=[stat_spec, stat_spec, stat_spec],
        ),
        compiler_params=pltpu.CompilerParams(
            dimension_semantics=("parallel", "arbitrary"),
            vmem_limit_bytes=vmem_limit),
    )(x, lbl)

    # Tiny O(n_classes) combine in plain JAX (negligible vs the HBM stream).
    inter = jnp.sum(inter_p[:, :, 0], axis=0)   # (C,)
    ssum = jnp.sum(ssum_p[:, :, 0], axis=0)     # (C,)
    tsum = jnp.sum(tsum_p[:, :, 0], axis=0)     # (C,)
    w = jnp.asarray([float(v) for v in weight], jnp.float32)
    dice = jnp.float32(1.0) - inter / (ssum + tsum + jnp.float32(1e-10))
    return jnp.sum(dice * w) / jnp.float32(n_classes)


def dice_loss_ref(inputs, target, n_classes, weight=None, softmax=False):
    """Pure-JAX reference mirroring the PyTorch module."""
    if softmax:
        inputs = jax.nn.softmax(inputs, axis=1)
    if weight is None:
        weight = [1.0] * n_classes
    tgt = target.astype(jnp.float32)
    one_hot = jnp.concatenate(
        [(tgt == i).astype(jnp.float32) for i in range(n_classes)], axis=1)
    loss = jnp.float32(0.0)
    for i in range(n_classes):
        s = inputs[:, i].astype(jnp.float32)
        t = one_hot[:, i]
        inter = jnp.sum(s * t)
        union = jnp.sum(s * s) + jnp.sum(t * t) + 1e-10
        loss = loss + (1.0 - inter / union) * weight[i]
    return loss / n_classes


if __name__ == "__main__":
    key = jax.random.PRNGKey(0)
    k_logits, k_target = jax.random.split(key)

    n_classes = 4
    N, D, H, W = 2, 8, 16, 16           # small 3D cardiac-style volume

    logits = jax.random.normal(k_logits, (N, n_classes, D, H, W), jnp.float32)
    probs = jax.nn.softmax(logits, axis=1)                    # module expects scores
    target = jax.random.randint(k_target, (N, 1, D, H, W), 0, n_classes, jnp.int32)

    # 1) plain probabilities, uniform weights, auto tile (single full block).
    loss = jax.block_until_ready(dice_loss(probs, target, n_classes))
    ref = jax.block_until_ready(dice_loss_ref(probs, target, n_classes))
    np.testing.assert_allclose(np.asarray(loss), np.asarray(ref), rtol=1e-5, atol=1e-6)

    # 2) softmax-in-forward path with class weights, and a small tile to
    #    exercise the multi-tile + partial-tile masking path.
    wts = [0.5, 1.0, 1.5, 2.0]
    loss_w = jax.block_until_ready(
        dice_loss(logits, target, n_classes, weight=wts, softmax=True, tile_s=896))
    ref_w = jax.block_until_ready(
        dice_loss_ref(logits, target, n_classes, weight=wts, softmax=True))
    np.testing.assert_allclose(np.asarray(loss_w), np.asarray(ref_w), rtol=1e-5, atol=1e-6)

    print("KERNEL_OK")
</pallas_src>

<mosaic_0001>
module attributes {stable_mosaic.version = 11 : i64} {
  func.func @_dice_stats_kernel(%arg0: i32, %arg1: i32, %arg2: memref<1x4x2048xf32, #tpu.memory_space<vmem>>, %arg3: memref<1x1x2048xi32, #tpu.memory_space<vmem>>, %arg4: memref<1x4x1xf32, #tpu.memory_space<vmem>>, %arg5: memref<1x4x1xf32, #tpu.memory_space<vmem>>, %arg6: memref<1x4x1xf32, #tpu.memory_space<vmem>>) attributes {dimension_semantics = [#tpu.dimension_semantics<parallel>, #tpu.dimension_semantics<arbitrary>], iteration_bounds = array<i64: 2, 1>, scalar_prefetch = 0 : i64, scratch_operands = 0 : i64, tpu.core_type = #tpu.core_type<tc>, window_params = [{transform_indices = @transform_0, window_bounds = array<i64: 1, 4, 2048>}, {transform_indices = @transform_1, window_bounds = array<i64: 1, 1, 2048>}, {transform_indices = @transform_2, window_bounds = array<i64: 1, 4, 1>}, {transform_indices = @transform_3, window_bounds = array<i64: 1, 4, 1>}, {transform_indices = @transform_4, window_bounds = array<i64: 1, 4, 1>}]} {
    %c0_i32 = arith.constant 0 : i32
    %0 = arith.cmpi eq, %arg1, %c0_i32 : i32
    %1 = arith.extui %0 : i1 to i32
    %c0_i32_0 = arith.constant 0 : i32
    %2 = arith.cmpi ne, %1, %c0_i32_0 : i32
    scf.if %2 {
      %cst_26 = arith.constant 0.000000e+00 : f32
      %41 = vector.broadcast %cst_26 : f32 to vector<1x4x1xf32>
      %c0_27 = arith.constant 0 : index
      %c0_28 = arith.constant 0 : index
      %c0_29 = arith.constant 0 : index
      %42 = vector.load %arg4[%c0_27, %c0_28, %c0_29] : memref<1x4x1xf32, #tpu.memory_space<vmem>>, vector<1x4x1xf32>
      tpu.vector_store %arg4[%c0_27, %c0_28, %c0_29], %41 {strides = array<i32>} : memref<1x4x1xf32, #tpu.memory_space<vmem>>, vector<1x4x1xf32>,
      %cst_30 = arith.constant 0.000000e+00 : f32
      %43 = vector.broadcast %cst_30 : f32 to vector<1x4x1xf32>
      %c0_31 = arith.constant 0 : index
      %c0_32 = arith.constant 0 : index
      %c0_33 = arith.constant 0 : index
      %44 = vector.load %arg5[%c0_31, %c0_32, %c0_33] : memref<1x4x1xf32, #tpu.memory_space<vmem>>, vector<1x4x1xf32>
      tpu.vector_store %arg5[%c0_31, %c0_32, %c0_33], %43 {strides = array<i32>} : memref<1x4x1xf32, #tpu.memory_space<vmem>>, vector<1x4x1xf32>,
      %cst_34 = arith.constant 0.000000e+00 : f32
      %45 = vector.broadcast %cst_34 : f32 to vector<1x4x1xf32>
      %c0_35 = arith.constant 0 : index
      %c0_36 = arith.constant 0 : index
      %c0_37 = arith.constant 0 : index
      %46 = vector.load %arg6[%c0_35, %c0_36, %c0_37] : memref<1x4x1xf32, #tpu.memory_space<vmem>>, vector<1x4x1xf32>
      tpu.vector_store %arg6[%c0_35, %c0_36, %c0_37], %45 {strides = array<i32>} : memref<1x4x1xf32, #tpu.memory_space<vmem>>, vector<1x4x1xf32>,
    } else {
    }
    %c0 = arith.constant 0 : index
    %c0_1 = arith.constant 0 : index
    %c0_2 = arith.constant 0 : index
    %3 = vector.load %arg2[%c0, %c0_1, %c0_2] : memref<1x4x2048xf32, #tpu.memory_space<vmem>>, vector<1x4x2048xf32>
    %4 = vector.shape_cast %3 : vector<1x4x2048xf32> to vector<4x2048xf32>
    %c0_3 = arith.constant 0 : index
    %c0_4 = arith.constant 0 : index
    %c0_5 = arith.constant 0 : index
    %5 = vector.load %arg3[%c0_3, %c0_4, %c0_5] : memref<1x1x2048xi32, #tpu.memory_space<vmem>>, vector<1x1x2048xi32>
    %6 = vector.shape_cast %5 : vector<1x1x2048xi32> to vector<1x2048xi32>
    %7 = arith.sitofp %6 : vector<1x2048xi32> to vector<1x2048xf32>
    %8 = tpu.iota {dimensions = array<i32: 0>} : vector<4x1xi32>
    %9 = arith.sitofp %8 : vector<4x1xi32> to vector<4x1xf32>
    %10 = vector.broadcast %7 : vector<1x2048xf32> to vector<4x2048xf32>
    %11 = vector.broadcast %9 : vector<4x1xf32> to vector<4x2048xf32>
    %12 = arith.cmpf oeq, %10, %11 : vector<4x2048xf32>
    %13 = arith.extui %12 : vector<4x2048xi1> to vector<4x2048xi32>
    %14 = arith.sitofp %13 : vector<4x2048xi32> to vector<4x2048xf32>
    %c0_6 = arith.constant 0 : index
    %c0_7 = arith.constant 0 : index
    %c0_8 = arith.constant 0 : index
    %15 = vector.load %arg4[%c0_6, %c0_7, %c0_8] : memref<1x4x1xf32, #tpu.memory_space<vmem>>, vector<1x4x1xf32>
    %16 = vector.shape_cast %15 : vector<1x4x1xf32> to vector<4x1xf32>
    %17 = arith.mulf %4, %14 : vector<4x2048xf32>
    %cst = arith.constant dense<0.000000e+00> : vector<4xf32>
    %18 = vector.multi_reduction <add>, %17, %cst [1] : vector<4x2048xf32> to vector<4xf32>
    %19 = vector.shape_cast %18 : vector<4xf32> to vector<4x1xf32>
    %20 = arith.addf %16, %19 : vector<4x1xf32>
    %c0_9 = arith.constant 0 : index
    %c0_10 = arith.constant 0 : index
    %c0_11 = arith.constant 0 : index
    %21 = vector.load %arg4[%c0_9, %c0_10, %c0_11] : memref<1x4x1xf32, #tpu.memory_space<vmem>>, vector<1x4x1xf32>
    %22 = vector.shape_cast %21 : vector<1x4x1xf32> to vector<4x1xf32>
    %23 = vector.shape_cast %20 : vector<4x1xf32> to vector<1x4x1xf32>
    tpu.vector_store %arg4[%c0_9, %c0_10, %c0_11], %23 {strides = array<i32>} : memref<1x4x1xf32, #tpu.memory_space<vmem>>, vector<1x4x1xf32>,
    %c0_12 = arith.constant 0 : index
    %c0_13 = arith.constant 0 : index
    %c0_14 = arith.constant 0 : index
    %24 = vector.load %arg5[%c0_12, %c0_13, %c0_14] : memref<1x4x1xf32, #tpu.memory_space<vmem>>, vector<1x4x1xf32>
    %25 = vector.shape_cast %24 : vector<1x4x1xf32> to vector<4x1xf32>
    %26 = arith.mulf %4, %4 : vector<4x2048xf32>
    %cst_15 = arith.constant dense<0.000000e+00> : vector<4xf32>
    %27 = vector.multi_reduction <add>, %26, %cst_15 [1] : vector<4x2048xf32> to vector<4xf32>
    %28 = vector.shape_cast %27 : vector<4xf32> to vector<4x1xf32>
    %29 = arith.addf %25, %28 : vector<4x1xf32>
    %c0_16 = arith.constant 0 : index
    %c0_17 = arith.constant 0 : index
    %c0_18 = arith.constant 0 : index
    %30 = vector.load %arg5[%c0_16, %c0_17, %c0_18] : memref<1x4x1xf32, #tpu.memory_space<vmem>>, vector<1x4x1xf32>
    %31 = vector.shape_cast %30 : vector<1x4x1xf32> to vector<4x1xf32>
    %32 = vector.shape_cast %29 : vector<4x1xf32> to vector<1x4x1xf32>
    tpu.vector_store %arg5[%c0_16, %c0_17, %c0_18], %32 {strides = array<i32>} : memref<1x4x1xf32, #tpu.memory_space<vmem>>, vector<1x4x1xf32>,
    %c0_19 = arith.constant 0 : index
    %c0_20 = arith.constant 0 : index
    %c0_21 = arith.constant 0 : index
    %33 = vector.load %arg6[%c0_19, %c0_20, %c0_21] : memref<1x4x1xf32, #tpu.memory_space<vmem>>, vector<1x4x1xf32>
    %34 = vector.shape_cast %33 : vector<1x4x1xf32> to vector<4x1xf32>
    %cst_22 = arith.constant dense<0.000000e+00> : vector<4xf32>
    %35 = vector.multi_reduction <add>, %14, %cst_22 [1] : vector<4x2048xf32> to vector<4xf32>
    %36 = vector.shape_cast %35 : vector<4xf32> to vector<4x1xf32>
    %37 = arith.addf %34, %36 : vector<4x1xf32>
    %c0_23 = arith.constant 0 : index
    %c0_24 = arith.constant 0 : index
    %c0_25 = arith.constant 0 : index
    %38 = vector.load %arg6[%c0_23, %c0_24, %c0_25] : memref<1x4x1xf32, #tpu.memory_space<vmem>>, vector<1x4x1xf32>
    %39 = vector.shape_cast %38 : vector<1x4x1xf32> to vector<4x1xf32>
    %40 = vector.shape_cast %37 : vector<4x1xf32> to vector<1x4x1xf32>
    tpu.vector_store %arg6[%c0_23, %c0_24, %c0_25], %40 {strides = array<i32>} : memref<1x4x1xf32, #tpu.memory_space<vmem>>, vector<1x4x1xf32>,
    return
  }
  func.func @transform_0(%arg0: i32, %arg1: i32) -> (i32, i32, i32) {
    %c0_i32 = arith.constant 0 : i32
    %c0_i32_0 = arith.constant 0 : i32
    return %arg0, %c0_i32, %arg1 : i32, i32, i32
  }
  func.func @transform_1(%arg0: i32, %arg1: i32) -> (i32, i32, i32) {
    %c0_i32 = arith.constant 0 : i32
    %c0_i32_0 = arith.constant 0 : i32
    return %arg0, %c0_i32, %arg1 : i32, i32, i32
  }
  func.func @transform_2(%arg0: i32, %arg1: i32) -> (i32, i32, i32) {
    %c0_i32 = arith.constant 0 : i32
    %c0_i32_0 = arith.constant 0 : i32
    %c0_i32_1 = arith.constant 0 : i32
    return %arg0, %c0_i32, %c0_i32_0 : i32, i32, i32
  }
  func.func @transform_3(%arg0: i32, %arg1: i32) -> (i32, i32, i32) {
    %c0_i32 = arith.constant 0 : i32
    %c0_i32_0 = arith.constant 0 : i32
    %c0_i32_1 = arith.constant 0 : i32
    return %arg0, %c0_i32, %c0_i32_0 : i32, i32, i32
  }
  func.func @transform_4(%arg0: i32, %arg1: i32) -> (i32, i32, i32) {
    %c0_i32 = arith.constant 0 : i32
    %c0_i32_0 = arith.constant 0 : i32
    %c0_i32_1 = arith.constant 0 : i32
    return %arg0, %c0_i32, %c0_i32_0 : i32, i32, i32
  }
}

</mosaic_0001>

<llo_original>
// kernel: tpu_custom_call.1
$region0: #{tpu_custom_call.1}
  #allocation0 [shape = 'u32[]', space=smem, size = 0x4, offset = 0x4, fixed_abs, tag = 'smem constant byte address 0x4 - core index']
  #allocation1 [shape = 'u32[72,128]{1,0:T(1,128)}', space=vmem, size = 0x9000, scoped, tag = 'internal scratch']
  %s0 = inlined_call_operand.hbm [shape: f32[2,4,2048], index: 0, kind: input, shape index: {}]
  %s1 = inlined_call_operand.hbm [shape: s32[2,1,2048], index: 1, kind: input, shape index: {}]
  %s2 = inlined_call_operand.vmem [shape: f32[2,4,1], index: 2, kind: output, shape index: {0}]
  %s3 = inlined_call_operand.vmem [shape: f32[2,4,1], index: 3, kind: output, shape index: {1}]
  %s4 = inlined_call_operand.vmem [shape: f32[2,4,1], index: 4, kind: output, shape index: {2}]
  %5 = xla_tuple %s2, %s3, %s4
  %s6 = sld [smem:[#allocation0]]
  $region69: #{tpu_custom_call.1} parent=0
    _
  %s8 = ssub.s32 1, %s6
  %s9 = scalar_select 0, %s8, %s6
  $region1: #{tpu_custom_call.1} parent=0
    #allocation2 [shape = 'u8[65536]{0}', space=vmem, size = 0x10000, scoped, tag = 'input window, operand 0']
    #allocation3 [shape = 's32[2]{0}', space=sflag, size = 0x8, scoped, tag = 'scoped memory for tpu_custom_call.1']
    #allocation4 [shape = 'u8[16384]{0}', space=vmem, size = 0x4000, scoped, tag = 'input window, operand 1']
    #allocation5 [shape = 's32[2]{0}', space=sflag, size = 0x8, scoped, tag = 'scoped memory for tpu_custom_call.1']
    %10 = vsyncpa [#allocation3], 0
    %s11 = scalar_lea.sflag [#allocation3], 1
    %12 = vsyncpa %s11, 0
    %13 = vsyncpa [#allocation5], 0
    %s14 = scalar_lea.sflag [#allocation5], 1
    %15 = vsyncpa %s14, 0
    loop: start=0, step=1, limit=4
    $region2: #{tpu_custom_call.1} parent=1 // loop_pre_header
      _
    $region3: #{tpu_custom_call.1} parent=1 // loop_header
      %s17 = sphi 0, %s21
      %p18 = scmp.ge.s32.totalorder %s17, 4
      %s24 = sphi 0, %s36
      %s25 = sphi 0, %s32
      %s26 = sphi 0, %s24
      %s27 = sphi 0, %s25
      %s28 = sphi 0, %s26
      %s29 = sphi 0, %s27
      %s41 = sphi 0, %s43
      %s44 = sphi 0, %s41
      %s45 = sphi 0, %s44
      %s61 = sphi 0, %s45
      %s69 = sphi 0, %s71
      %s72 = sphi 0, %s69
      %s73 = sphi 0, %s72
      %s89 = sphi 0, %s73
      %s95 = sphi 0, %s97
      %s98 = sphi 0, %s95
      %s99 = sphi 0, %s98
      %s115 = sphi 0, %s99
      %s121 = sphi 0, %s123
      %s124 = sphi 0, %s121
      %s125 = sphi 0, %s124
      %s141 = sphi 0, %s125
      %s147 = sphi 0, %s149
      %s150 = sphi 0, %s147
      %s151 = sphi 0, %s150
      %s167 = sphi 0, %s151
    $region4: #{tpu_custom_call.1} parent=1 // loop_header_branch
      %20 = sbr.rel (%p18) target = $region8
    $region5: #{tpu_custom_call.1} parent=1 // loop_body
      %s22 = ssub.s32 %s17, 1
      %s23 = ssub.s32 %s17, 2
      %s30 = sadd.s32 1, %s25
      %p31 = scmp.ge.s32.totalorder %s30, 1
      %s32 = scalar_select %p31, 0, %s30
      %s33 = sadd.s32 1, %s24
      %s34 = scalar_select %p31, %s33, %s24
      %p35 = scmp.ge.s32.totalorder %s34, 2
      %s36 = scalar_select %p35, 0, %s34
      %s37 = ssub.s32 %s24, %s36
      %s38 = ssub.s32 %s25, %s32
      %s39 = sor.u32 %s37, %s38
      %p40 = scmp.eq.s32.totalorder %s39, 0
      %s42 = sadd.s32 %s41, 1
      %s43 = scalar_select %p40, %s41, %s42
      %p46 = pneg %p40
      %p47 = scmp.eq.s32.totalorder %s17, 1
      %p48 = por %p46, %p47
      %p49 = scmp.ne.s32.totalorder %s41, %s44
      %p50 = scmp.eq.s32.totalorder %s17, 0
      %p51 = por %p49, %p50
      %p52 = scmp.ne.s32.totalorder %s41, %s44
      %p53 = scmp.eq.s32.totalorder %s22, 1
      %p54 = por %p52, %p53
      %p55 = scmp.ne.s32.totalorder %s44, %s45
      %p56 = scmp.eq.s32.totalorder %s22, 0
      %p57 = por %p55, %p56
      %p58 = scmp.ne.s32.totalorder %s44, %s45
      %p59 = scmp.eq.s32.totalorder %s23, 1
      %p60 = por %p58, %p59
      %p62 = scmp.ne.s32.totalorder %s45, %s61
      %p63 = scmp.eq.s32.totalorder %s23, 0
      %p64 = por %p62, %p63
      %s65 = ssub.s32 %s24, %s36
      %s66 = ssub.s32 %s25, %s32
      %s67 = sor.u32 %s65, %s66
      %p68 = scmp.eq.s32.totalorder %s67, 0
      %s70 = sadd.s32 %s69, 1
      %s71 = scalar_select %p68, %s69, %s70
      %p74 = pneg %p68
      %p75 = scmp.eq.s32.totalorder %s17, 1
      %p76 = por %p74, %p75
      %p77 = scmp.ne.s32.totalorder %s69, %s72
      %p78 = scmp.eq.s32.totalorder %s17, 0
      %p79 = por %p77, %p78
      %p80 = scmp.ne.s32.totalorder %s69, %s72
      %p81 = scmp.eq.s32.totalorder %s22, 1
      %p82 = por %p80, %p81
      %p83 = scmp.ne.s32.totalorder %s72, %s73
      %p84 = scmp.eq.s32.totalorder %s22, 0
      %p85 = por %p83, %p84
      %p86 = scmp.ne.s32.totalorder %s72, %s73
      %p87 = scmp.eq.s32.totalorder %s23, 1
      %p88 = por %p86, %p87
      %p90 = scmp.ne.s32.totalorder %s73, %s89
      %p91 = scmp.eq.s32.totalorder %s23, 0
      %p92 = por %p90, %p91
      %s93 = ssub.s32 %s24, %s36
      %p94 = scmp.eq.s32.totalorder %s93, 0
      %s96 = sadd.s32 %s95, 1
      %s97 = scalar_select %p94, %s95, %s96
      %p100 = pneg %p94
      %p101 = scmp.eq.s32.totalorder %s17, 1
      %p102 = por %p100, %p101
      %p103 = scmp.ne.s32.totalorder %s95, %s98
      %p104 = scmp.eq.s32.totalorder %s17, 0
      %p105 = por %p103, %p104
      %p106 = scmp.ne.s32.totalorder %s95, %s98
      %p107 = scmp.eq.s32.totalorder %s22, 1
      %p108 = por %p106, %p107
      %p109 = scmp.ne.s32.totalorder %s98, %s99
      %p110 = scmp.eq.s32.totalorder %s22, 0
      %p111 = por %p109, %p110
      %p112 = scmp.ne.s32.totalorder %s98, %s99
      %p113 = scmp.eq.s32.totalorder %s23, 1
      %p114 = por %p112, %p113
      %p116 = scmp.ne.s32.totalorder %s99, %s115
      %p117 = scmp.eq.s32.totalorder %s23, 0
      %p118 = por %p116, %p117
      %s119 = ssub.s32 %s24, %s36
      %p120 = scmp.eq.s32.totalorder %s119, 0
      %s122 = sadd.s32 %s121, 1
      %s123 = scalar_select %p120, %s121, %s122
      %p126 = pneg %p120
      %p127 = scmp.eq.s32.totalorder %s17, 1
      %p128 = por %p126, %p127
      %p129 = scmp.ne.s32.totalorder %s121, %s124
      %p130 = scmp.eq.s32.totalorder %s17, 0
      %p131 = por %p129, %p130
      %p132 = scmp.ne.s32.totalorder %s121, %s124
      %p133 = scmp.eq.s32.totalorder %s22, 1
      %p134 = por %p132, %p133
      %p135 = scmp.ne.s32.totalorder %s124, %s125
      %p136 = scmp.eq.s32.totalorder %s22, 0
      %p137 = por %p135, %p136
      %p138 = scmp.ne.s32.totalorder %s124, %s125
      %p139 = scmp.eq.s32.totalorder %s23, 1
      %p140 = por %p138, %p139
      %p142 = scmp.ne.s32.totalorder %s125, %s141
      %p143 = scmp.eq.s32.totalorder %s23, 0
      %p144 = por %p142, %p143
      %s145 = ssub.s32 %s24, %s36
      %p146 = scmp.eq.s32.totalorder %s145, 0
      %s148 = sadd.s32 %s147, 1
      %s149 = scalar_select %p146, %s147, %s148
      %p152 = pneg %p146
      %p153 = scmp.eq.s32.totalorder %s17, 1
      %p154 = por %p152, %p153
      %p155 = scmp.ne.s32.totalorder %s147, %s150
      %p156 = scmp.eq.s32.totalorder %s17, 0
      %p157 = por %p155, %p156
      %p158 = scmp.ne.s32.totalorder %s147, %s150
      %p159 = scmp.eq.s32.totalorder %s22, 1
      %p160 = por %p158, %p159
      %p161 = scmp.ne.s32.totalorder %s150, %s151
      %p162 = scmp.eq.s32.totalorder %s22, 0
      %p163 = por %p161, %p162
      %p164 = scmp.ne.s32.totalorder %s150, %s151
      %p165 = scmp.eq.s32.totalorder %s23, 1
      %p166 = por %p164, %p165
      %p168 = scmp.ne.s32.totalorder %s151, %s167
      %p169 = scmp.eq.s32.totalorder %s23, 0
      %p170 = por %p168, %p169
      %p171 = scmp.le.s32.totalorder 1, %s17
      %p172 = scmp.lt.s32.totalorder %s17, 3
      %p173 = pnand %p171, %p172
      %p174 = pneg %p173
      // Predicated region
      $region9: #{tpu_custom_call.1} parent=5 // pred_check
        _
      $region10: #{tpu_custom_call.1} parent=5 // pred_check_branch
        %176 = sbr.rel (%p173) target = $region12
      $region11: #{tpu_custom_call.1} parent=5 // pred_region
        %s177 = ssub.s32 %s17, 1
      $region12: #{tpu_custom_call.1} parent=5 // pred_fallthru
        _
      %p178 = scmp.lt.s32.totalorder %s17, 2
      // Predicated region
      $region13: #{tpu_custom_call.1} parent=5 // pred_check
        %p179 = pneg %p178
      $region14: #{tpu_custom_call.1} parent=5 // pred_check_branch
        %181 = sbr.rel (%p179) target = $region16
      $region15: #{tpu_custom_call.1} parent=5 // pred_region
        // Predicated region
        $region17: #{tpu_custom_call.1} parent=15 // pred_check
          %p182 = pneg %p51
        $region18: #{tpu_custom_call.1} parent=15 // pred_check_branch
          %184 = sbr.rel (%p182) target = $region20
        $region19: #{tpu_custom_call.1} parent=15 // pred_region
          %s185 = sand.u32 %s41, 1
          %s186 = scalar_lea.sflag [#allocation3], %s185
          %s187 = sand.u32 %s41, 1
          %s188 = smul.addr %s187, 64
          %s189 = scalar_lea.vmem [#allocation2], %s188
          %s190 = smul.u32 16, %s25
          %192 = vsyncadd %s186, 0
          %s193 = smul.addr %s24, 16
          %s194 = sadd.s32 %s190, %s193
          %s195 = smul.addr %s194, 4
          %s196 = scalar_lea.hbm %s0, %s195
          %s198 = sshll.u32 %s196, 4
          %s199 = int_to_ptr.hbm [resolvable:$true] %s198
          %s200 = sshll.u32 %s189, 4
          %s201 = int_to_ptr.vmem [resolvable:$true] %s200
          %203 = dma.hbm_to_vmem [thread:$0]  %s199, 1024, %s201, %s186
        $region20: #{tpu_custom_call.1} parent=15 // pred_fallthru
          _
        // Predicated region
        $region21: #{tpu_custom_call.1} parent=15 // pred_check
          %p204 = pneg %p79
        $region22: #{tpu_custom_call.1} parent=15 // pred_check_branch
          %206 = sbr.rel (%p204) target = $region24
        $region23: #{tpu_custom_call.1} parent=15 // pred_region
          %s207 = sand.u32 %s69, 1
          %s208 = scalar_lea.sflag [#allocation5], %s207
          %s209 = sand.u32 %s69, 1
          %s210 = smul.addr %s209, 16
          %s211 = scalar_lea.vmem [#allocation4], %s210
          %s212 = smul.u32 16, %s25
          %214 = vsyncadd %s208, 0
          %s215 = smul.addr %s24, 16
          %s216 = sadd.s32 %s212, %s215
          %s217 = scalar_lea.hbm %s1, %s216
          %s219 = sshll.u32 %s217, 4
          %s220 = int_to_ptr.hbm [resolvable:$true] %s219
          %s221 = sshll.u32 %s211, 4
          %s222 = int_to_ptr.vmem [resolvable:$true] %s221
          %224 = dma.hbm_to_vmem [thread:$0]  %s220, 256, %s222, %s208
        $region24: #{tpu_custom_call.1} parent=15 // pred_fallthru
          _
      $region16: #{tpu_custom_call.1} parent=5 // pred_fallthru
        _
      %p225 = scmp.le.s32.totalorder 1, %s17
      %p226 = scmp.lt.s32.totalorder %s17, 3
      %p227 = pnand %p225, %p226
      %p228 = pneg %p227
      // Predicated region
      $region25: #{tpu_custom_call.1} parent=5 // pred_check
        _
      $region26: #{tpu_custom_call.1} parent=5 // pred_check_branch
        %230 = sbr.rel (%p227) target = $region28
      $region27: #{tpu_custom_call.1} parent=5 // pred_region
        %s231 = ssub.s32 %s17, 1
        %s232 = sand.u32 %s44, 1
        %s233 = scalar_lea.sflag [#allocation3], %s232
        %s234 = sand.u32 %s44, 1
        %s235 = smul.addr %s234, 64
        %s236 = scalar_lea.vmem [#allocation2], %s235
        // Predicated region
        $region29: #{tpu_custom_call.1} parent=27 // pred_check
          %p237 = pneg %p57
        $region30: #{tpu_custom_call.1} parent=27 // pred_check_branch
          %239 = sbr.rel (%p237) target = $region32
        $region31: #{tpu_custom_call.1} parent=27 // pred_region
          %241 = dma.done %s233, 1024
        $region32: #{tpu_custom_call.1} parent=27 // pred_fallthru
          _
        %s242 = sand.u32 %s72, 1
        %s243 = scalar_lea.sflag [#allocation5], %s242
        %s244 = sand.u32 %s72, 1
        %s245 = smul.addr %s244, 16
        %s246 = scalar_lea.vmem [#allocation4], %s245
        // Predicated region
        $region33: #{tpu_custom_call.1} parent=27 // pred_check
          %p247 = pneg %p85
        $region34: #{tpu_custom_call.1} parent=27 // pred_check_branch
          %249 = sbr.rel (%p247) target = $region36
        $region35: #{tpu_custom_call.1} parent=27 // pred_region
          %251 = dma.done %s243, 256
        $region36: #{tpu_custom_call.1} parent=27 // pred_fallthru
          _
        %s252 = sand.u32 %s44, 1
        %s253 = scalar_lea.sflag [#allocation3], %s252
        %s254 = sand.u32 %s44, 1
        %s255 = smul.addr %s254, 64
        %s256 = scalar_lea.vmem [#allocation2], %s255
        %p257 = pneg %p57
        %p258 = pneg %p54
        %s259 = sand.u32 %s72, 1
        %s260 = scalar_lea.sflag [#allocation5], %s259
        %s261 = sand.u32 %s72, 1
        %s262 = smul.addr %s261, 16
        %s263 = scalar_lea.vmem [#allocation4], %s262
        %p264 = pneg %p85
        %p265 = pneg %p82
        %p266 = pneg %p111
        %p267 = pneg %p108
        %p268 = scmp.lt.s32.totalorder %s26, 1
        %s269 = scalar_select %p268, %s26, 1
        %s270 = smul.addr %s269, 4
        %s271 = scalar_lea.vmem %s2, %s270
        %p272 = pneg %p137
        %p273 = pneg %p134
        %p274 = scmp.lt.s32.totalorder %s26, 1
        %s275 = scalar_select %p274, %s26, 1
        %s276 = smul.addr %s275, 4
        %s277 = scalar_lea.vmem %s3, %s276
        %p278 = pneg %p163
        %p279 = pneg %p160
        %p280 = scmp.lt.s32.totalorder %s26, 1
        %s281 = scalar_select %p280, %s26, 1
        %s282 = smul.addr %s281, 4
        %s283 = scalar_lea.vmem %s4, %s282
        %s284 = smul.u32 16, %s27
        %s285 = smul.u32 16, %s27
        %p286 = scmp.lt.s32.totalorder %s26, 1
        %s287 = scalar_select %p286, %s26, 1
        %s288 = smul.addr %s287, 4
        %s289 = scalar_lea.vmem %s2, %s288
        %p290 = scmp.lt.s32.totalorder %s26, 1
        %s291 = scalar_select %p290, %s26, 1
        %s292 = smul.addr %s291, 4
        %s293 = scalar_lea.vmem %s3, %s292
        %p294 = scmp.lt.s32.totalorder %s26, 1
        %s295 = scalar_select %p294, %s26, 1
        %s296 = smul.addr %s295, 4
        %s297 = scalar_lea.vmem %s4, %s296
        %p298 = scmp.eq.s32.totalorder %s27, 0
        // Predicated region
        $region37: #{tpu_custom_call.1} parent=27 // pred_check
          %p299 = pneg %p298
        $region38: #{tpu_custom_call.1} parent=27 // pred_check_branch
          %301 = sbr.rel (%p299) target = $region40
        $region39: #{tpu_custom_call.1} parent=27 // pred_region
          %vm302 = vcmask 3072
          %303 = vst.msk [vmem:[%s289] sm:$0xf] %vm302, 0.0
          %304 = vst.msk [vmem:[%s293] sm:$0xf] %vm302, 0.0
          %305 = vst.msk [vmem:[%s297] sm:$0xf] %vm302, 0.0
        $region40: #{tpu_custom_call.1} parent=27 // pred_fallthru
          _
        %v306 = vld [vmem:[%s236] sm:$0xff]
        %v307 = vld [vmem:[%s236 + $0x8] sm:$0xff]
        %v308 = vld [vmem:[%s236 + $0x10] sm:$0xff]
        %v309 = vld [vmem:[%s236 + $0x18] sm:$0xff]
        %v310 = vld [vmem:[%s236 + $0x20] sm:$0xff]
        %v311 = vld [vmem:[%s236 + $0x28] sm:$0xff]
        %v312 = vld [vmem:[%s236 + $0x30] sm:$0xff]
        %v313 = vld [vmem:[%s236 + $0x38] sm:$0xff]
        %v314 = vld [vmem:[%s246] sm:$0xff]
        %v315 = vld [vmem:[%s246 + $0x8] sm:$0xff]
        %v316 = vcvt.s32.f32 %v314
        %v317 = vcvt.s32.f32 %v315
        %v318 = vlaneseq
        %v319 = vshrl.u32 %v318, 7
        %v320 = vcvt.s32.f32 %v319
        %v323 = vperm.slane %v316, 0
        %v324 = vperm.slane %v316, 1
        %v325 = vperm.slane %v316, 2
        %v326 = vperm.slane %v316, 3
        %v327 = vperm.slane %v316, 4
        %v328 = vperm.slane %v316, 5
        %v329 = vperm.slane %v316, 6
        %v330 = vperm.slane %v316, 7
        %v331 = vperm.slane %v317, 0
        %v332 = vperm.slane %v317, 1
        %v333 = vperm.slane %v317, 2
        %v334 = vperm.slane %v317, 3
        %v335 = vperm.slane %v317, 4
        %v336 = vperm.slane %v317, 5
        %v337 = vperm.slane %v317, 6
        %v338 = vperm.slane %v317, 7
        %vm355 = vcmp.eq.f32.partialorder %v323, %v320
        %vm356 = vcmp.eq.f32.partialorder %v324, %v320
        %vm357 = vcmp.eq.f32.partialorder %v325, %v320
        %vm358 = vcmp.eq.f32.partialorder %v326, %v320
        %vm359 = vcmp.eq.f32.partialorder %v327, %v320
        %vm360 = vcmp.eq.f32.partialorder %v328, %v320
        %vm361 = vcmp.eq.f32.partialorder %v329, %v320
        %vm362 = vcmp.eq.f32.partialorder %v330, %v320
        %vm363 = vcmp.eq.f32.partialorder %v331, %v320
        %vm364 = vcmp.eq.f32.partialorder %v332, %v320
        %vm365 = vcmp.eq.f32.partialorder %v333, %v320
        %vm366 = vcmp.eq.f32.partialorder %v334, %v320
        %vm367 = vcmp.eq.f32.partialorder %v335, %v320
        %vm368 = vcmp.eq.f32.partialorder %v336, %v320
        %vm369 = vcmp.eq.f32.partialorder %v337, %v320
        %vm370 = vcmp.eq.f32.partialorder %v338, %v320
        %v371 = vsel %vm355, 1, 0
        %v372 = vsel %vm356, 1, 0
        %v373 = vsel %vm357, 1, 0
        %v374 = vsel %vm358, 1, 0
        %v375 = vsel %vm359, 1, 0
        %v376 = vsel %vm360, 1, 0
        %v377 = vsel %vm361, 1, 0
        %v378 = vsel %vm362, 1, 0
        %v379 = vsel %vm363, 1, 0
        %v380 = vsel %vm364, 1, 0
        %v381 = vsel %vm365, 1, 0
        %v382 = vsel %vm366, 1, 0
        %v383 = vsel %vm367, 1, 0
        %v384 = vsel %vm368, 1, 0
        %v385 = vsel %vm369, 1, 0
        %v386 = vsel %vm370, 1, 0
        %v387 = vcvt.s32.f32 %v371
        %v388 = vcvt.s32.f32 %v372
        %v389 = vcvt.s32.f32 %v373
        %v390 = vcvt.s32.f32 %v374
        %v391 = vcvt.s32.f32 %v375
        %v392 = vcvt.s32.f32 %v376
        %v393 = vcvt.s32.f32 %v377
        %v394 = vcvt.s32.f32 %v378
        %v395 = vcvt.s32.f32 %v379
        %v396 = vcvt.s32.f32 %v380
        %v397 = vcvt.s32.f32 %v381
        %v398 = vcvt.s32.f32 %v382
        %v399 = vcvt.s32.f32 %v383
        %v400 = vcvt.s32.f32 %v384
        %v401 = vcvt.s32.f32 %v385
        %v402 = vcvt.s32.f32 %v386
        %v403 = vld [vmem:[%s289] sm:$0xf]
        %v420 = vrot.slane %v388, 4
        %v421 = vrot.slane %v390, 4
        %v422 = vrot.slane %v392, 4
        %v423 = vrot.slane %v394, 4
        %v424 = vrot.slane %v396, 4
        %v425 = vrot.slane %v398, 4
        %v426 = vrot.slane %v400, 4
        %v427 = vrot.slane %v402, 4
        %vm428 = vcmask 1043456
        %v429 = vsel %vm428, %v387, %v420
        %v430 = vsel %vm428, %v389, %v421
        %v431 = vsel %vm428, %v391, %v422
        %v432 = vsel %vm428, %v393, %v423
        %v433 = vsel %vm428, %v395, %v424
        %v434 = vsel %vm428, %v397, %v425
        %v435 = vsel %vm428, %v399, %v426
        %v436 = vsel %vm428, %v401, %v427
        %v445 = vmul.f32 %v306, %v429
        %v446 = vmul.f32 %v307, %v430
        %v447 = vmul.f32 %v308, %v431
        %v448 = vmul.f32 %v309, %v432
        %v449 = vmul.f32 %v310, %v433
        %v450 = vmul.f32 %v311, %v434
        %v451 = vmul.f32 %v312, %v435
        %v452 = vmul.f32 %v313, %v436
        %461 = vst [vmem:[#allocation1] ss:$2 sm:$0xff] %v445
        %s462 = scalar_lea.vmem [#allocation1], 16
        %463 = vst [vmem:[%s462] ss:$2 sm:$0xff] %v446
        %s464 = scalar_lea.vmem [#allocation1], 32
        %465 = vst [vmem:[%s464] ss:$2 sm:$0xff] %v447
        %s466 = scalar_lea.vmem [#allocation1], 48
        %467 = vst [vmem:[%s466] ss:$2 sm:$0xff] %v448
        %v468 = vld.sshfl [vmem:[#allocation1] sm:$0xff pattern:$0x75316420]
        %v469 = vld.sshfl [vmem:[#allocation1 + $0x8] sm:$0xff pattern:$0x75316420]
        %v470 = vld.sshfl [vmem:[#allocation1 + $0x10] sm:$0xff pattern:$0x75316420]
        %v471 = vld.sshfl [vmem:[#allocation1 + $0x18] sm:$0xff pattern:$0x75316420]
        %v472 = vld.sshfl [vmem:[#allocation1 + $0x20] sm:$0xff pattern:$0x75316420]
        %v473 = vld.sshfl [vmem:[#allocation1 + $0x28] sm:$0xff pattern:$0x75316420]
        %v474 = vld.sshfl [vmem:[#allocation1 + $0x30] sm:$0xff pattern:$0x75316420]
        %v475 = vld.sshfl [vmem:[#allocation1 + $0x38] sm:$0xff pattern:$0x75316420]
        %476 = vst [vmem:[#allocation1] ss:$2 sm:$0xff] %v449
        %477 = vst [vmem:[%s462] ss:$2 sm:$0xff] %v450
        %478 = vst [vmem:[%s464] ss:$2 sm:$0xff] %v451
        %479 = vst [vmem:[%s466] ss:$2 sm:$0xff] %v452
        %v480 = vld.sshfl [vmem:[#allocation1] sm:$0xff pattern:$0x75316420]
        %v481 = vld.sshfl [vmem:[#allocation1 + $0x8] sm:$0xff pattern:$0x75316420]
        %v482 = vld.sshfl [vmem:[#allocation1 + $0x10] sm:$0xff pattern:$0x75316420]
        %v483 = vld.sshfl [vmem:[#allocation1 + $0x18] sm:$0xff pattern:$0x75316420]
        %v484 = vld.sshfl [vmem:[#allocation1 + $0x20] sm:$0xff pattern:$0x75316420]
        %v485 = vld.sshfl [vmem:[#allocation1 + $0x28] sm:$0xff pattern:$0x75316420]
        %v486 = vld.sshfl [vmem:[#allocation1 + $0x30] sm:$0xff pattern:$0x75316420]
        %v487 = vld.sshfl [vmem:[#allocation1 + $0x38] sm:$0xff pattern:$0x75316420]
        %v504 = vsel %vm428, %v468, 0.0
        %v505 = vsel %vm428, %v469, 0.0
        %v506 = vadd.f32 %v504, %v505
        %v507 = vsel %vm428, %v470, 0.0
        %v508 = vadd.f32 %v506, %v507
        %v509 = vsel %vm428, %v471, 0.0
        %v510 = vadd.f32 %v508, %v509
        %v511 = vsel %vm428, %v472, 0.0
        %v512 = vadd.f32 %v510, %v511
        %v513 = vsel %vm428, %v473, 0.0
        %v514 = vadd.f32 %v512, %v513
        %v515 = vsel %vm428, %v474, 0.0
        %v516 = vadd.f32 %v514, %v515
        %v517 = vsel %vm428, %v475, 0.0
        %v518 = vadd.f32 %v516, %v517
        %v519 = vsel %vm428, %v480, 0.0
        %v520 = vadd.f32 %v518, %v519
        %v521 = vsel %vm428, %v481, 0.0
        %v522 = vadd.f32 %v520, %v521
        %v523 = vsel %vm428, %v482, 0.0
        %v524 = vadd.f32 %v522, %v523
        %v525 = vsel %vm428, %v483, 0.0
        %v526 = vadd.f32 %v524, %v525
        %v527 = vsel %vm428, %v484, 0.0
        %v528 = vadd.f32 %v526, %v527
        %v529 = vsel %vm428, %v485, 0.0
        %v530 = vadd.f32 %v528, %v529
        %v531 = vsel %vm428, %v486, 0.0
        %v532 = vadd.f32 %v530, %v531
        %v533 = vsel %vm428, %v487, 0.0
        %v534 = vadd.f32 %v532, %v533
        %535 = vadd.xlane.f32.xlu0 %v534
        %v536 = vpop.xlane.xlu0 %535
        %v537 = vadd.f32 %v403, %v536
        %vm538 = vcmask 3072
        %539 = vst.msk [vmem:[%s289] sm:$0xf] %vm538, %v537
        %v540 = vld [vmem:[%s293] sm:$0xf]
        %v541 = vmul.f32 %v306, %v306
        %v542 = vmul.f32 %v307, %v307
        %v543 = vmul.f32 %v308, %v308
        %v544 = vmul.f32 %v309, %v309
        %v545 = vmul.f32 %v310, %v310
        %v546 = vmul.f32 %v311, %v311
        %v547 = vmul.f32 %v312, %v312
        %v548 = vmul.f32 %v313, %v313
        %557 = vst [vmem:[#allocation1] ss:$2 sm:$0xff] %v541
        %s558 = scalar_lea.vmem [#allocation1], 16
        %559 = vst [vmem:[%s558] ss:$2 sm:$0xff] %v542
        %s560 = scalar_lea.vmem [#allocation1], 32
        %561 = vst [vmem:[%s560] ss:$2 sm:$0xff] %v543
        %s562 = scalar_lea.vmem [#allocation1], 48
        %563 = vst [vmem:[%s562] ss:$2 sm:$0xff] %v544
        %v564 = vld.sshfl [vmem:[#allocation1] sm:$0xff pattern:$0x75316420]
        %v565 = vld.sshfl [vmem:[#allocation1 + $0x8] sm:$0xff pattern:$0x75316420]
        %v566 = vld.sshfl [vmem:[#allocation1 + $0x10] sm:$0xff pattern:$0x75316420]
        %v567 = vld.sshfl [vmem:[#allocation1 + $0x18] sm:$0xff pattern:$0x75316420]
        %v568 = vld.sshfl [vmem:[#allocation1 + $0x20] sm:$0xff pattern:$0x75316420]
        %v569 = vld.sshfl [vmem:[#allocation1 + $0x28] sm:$0xff pattern:$0x75316420]
        %v570 = vld.sshfl [vmem:[#allocation1 + $0x30] sm:$0xff pattern:$0x75316420]
        %v571 = vld.sshfl [vmem:[#allocation1 + $0x38] sm:$0xff pattern:$0x75316420]
        %572 = vst [vmem:[#allocation1] ss:$2 sm:$0xff] %v545
        %573 = vst [vmem:[%s558] ss:$2 sm:$0xff] %v546
        %574 = vst [vmem:[%s560] ss:$2 sm:$0xff] %v547
        %575 = vst [vmem:[%s562] ss:$2 sm:$0xff] %v548
        %v576 = vld.sshfl [vmem:[#allocation1] sm:$0xff pattern:$0x75316420]
        %v577 = vld.sshfl [vmem:[#allocation1 + $0x8] sm:$0xff pattern:$0x75316420]
        %v578 = vld.sshfl [vmem:[#allocation1 + $0x10] sm:$0xff pattern:$0x75316420]
        %v579 = vld.sshfl [vmem:[#allocation1 + $0x18] sm:$0xff pattern:$0x75316420]
        %v580 = vld.sshfl [vmem:[#allocation1 + $0x20] sm:$0xff pattern:$0x75316420]
        %v581 = vld.sshfl [vmem:[#allocation1 + $0x28] sm:$0xff pattern:$0x75316420]
        %v582 = vld.sshfl [vmem:[#allocation1 + $0x30] sm:$0xff pattern:$0x75316420]
        %v583 = vld.sshfl [vmem:[#allocation1 + $0x38] sm:$0xff pattern:$0x75316420]
        %v600 = vsel %vm428, %v564, 0.0
        %v601 = vsel %vm428, %v565, 0.0
        %v602 = vadd.f32 %v600, %v601
        %v603 = vsel %vm428, %v566, 0.0
        %v604 = vadd.f32 %v602, %v603
        %v605 = vsel %vm428, %v567, 0.0
        %v606 = vadd.f32 %v604, %v605
        %v607 = vsel %vm428, %v568, 0.0
        %v608 = vadd.f32 %v606, %v607
        %v609 = vsel %vm428, %v569, 0.0
        %v610 = vadd.f32 %v608, %v609
        %v611 = vsel %vm428, %v570, 0.0
        %v612 = vadd.f32 %v610, %v611
        %v613 = vsel %vm428, %v571, 0.0
        %v614 = vadd.f32 %v612, %v613
        %v615 = vsel %vm428, %v576, 0.0
        %v616 = vadd.f32 %v614, %v615
        %v617 = vsel %vm428, %v577, 0.0
        %v618 = vadd.f32 %v616, %v617
        %v619 = vsel %vm428, %v578, 0.0
        %v620 = vadd.f32 %v618, %v619
        %v621 = vsel %vm428, %v579, 0.0
        %v622 = vadd.f32 %v620, %v621
        %v623 = vsel %vm428, %v580, 0.0
        %v624 = vadd.f32 %v622, %v623
        %v625 = vsel %vm428, %v581, 0.0
        %v626 = vadd.f32 %v624, %v625
        %v627 = vsel %vm428, %v582, 0.0
        %v628 = vadd.f32 %v626, %v627
        %v629 = vsel %vm428, %v583, 0.0
        %v630 = vadd.f32 %v628, %v629
        %631 = vadd.xlane.f32.xlu0 %v630
        %v632 = vpop.xlane.xlu0 %631
        %v633 = vadd.f32 %v540, %v632
        %634 = vst.msk [vmem:[%s293] sm:$0xf] %vm538, %v633
        %v635 = vld [vmem:[%s297] sm:$0xf]
        %v636 = vsel %vm428, %v387, 0.0
        %v637 = vsel %vm428, %v388, 0.0
        %v638 = vadd.f32 %v636, %v637
        %v639 = vsel %vm428, %v389, 0.0
        %v640 = vadd.f32 %v638, %v639
        %v641 = vsel %vm428, %v390, 0.0
        %v642 = vadd.f32 %v640, %v641
        %v643 = vsel %vm428, %v391, 0.0
        %v644 = vadd.f32 %v642, %v643
        %v645 = vsel %vm428, %v392, 0.0
        %v646 = vadd.f32 %v644, %v645
        %v647 = vsel %vm428, %v393, 0.0
        %v648 = vadd.f32 %v646, %v647
        %v649 = vsel %vm428, %v394, 0.0
        %v650 = vadd.f32 %v648, %v649
        %v651 = vsel %vm428, %v395, 0.0
        %v652 = vadd.f32 %v650, %v651
        %v653 = vsel %vm428, %v396, 0.0
        %v654 = vadd.f32 %v652, %v653
        %v655 = vsel %vm428, %v397, 0.0
        %v656 = vadd.f32 %v654, %v655
        %v657 = vsel %vm428, %v398, 0.0
        %v658 = vadd.f32 %v656, %v657
        %v659 = vsel %vm428, %v399, 0.0
        %v660 = vadd.f32 %v658, %v659
        %v661 = vsel %vm428, %v400, 0.0
        %v662 = vadd.f32 %v660, %v661
        %v663 = vsel %vm428, %v401, 0.0
        %v664 = vadd.f32 %v662, %v663
        %v665 = vsel %vm428, %v402, 0.0
        %v666 = vadd.f32 %v664, %v665
        %667 = vadd.xlane.f32.xlu0 %v666
        %v668 = vpop.xlane.xlu0 %667
        %v669 = vadd.f32 %v635, %v668
        %670 = vst.msk [vmem:[%s297] sm:$0xf] %vm538, %v669
        %p671 = scmp.lt.s32.totalorder %s26, 1
        %s672 = scalar_select %p671, %s26, 1
        %s673 = smul.addr %s672, 4
        %s674 = scalar_lea.vmem %s2, %s673
        %p675 = scmp.lt.s32.totalorder %s26, 1
        %s676 = scalar_select %p675, %s26, 1
        %s677 = smul.addr %s676, 4
        %s678 = scalar_lea.vmem %s3, %s677
        %p679 = scmp.lt.s32.totalorder %s26, 1
        %s680 = scalar_select %p679, %s26, 1
        %s681 = smul.addr %s680, 4
        %s682 = scalar_lea.vmem %s4, %s681
        // Predicated region
        $region41: #{tpu_custom_call.1} parent=27 // pred_check
          %p683 = pneg %p108
        $region42: #{tpu_custom_call.1} parent=27 // pred_check_branch
          %685 = sbr.rel (%p683) target = $region44
        $region43: #{tpu_custom_call.1} parent=27 // pred_region
          _
        $region44: #{tpu_custom_call.1} parent=27 // pred_fallthru
          _
        // Predicated region
        $region45: #{tpu_custom_call.1} parent=27 // pred_check
          %p686 = pneg %p134
        $region46: #{tpu_custom_call.1} parent=27 // pred_check_branch
          %688 = sbr.rel (%p686) target = $region48
        $region47: #{tpu_custom_call.1} parent=27 // pred_region
          _
        $region48: #{tpu_custom_call.1} parent=27 // pred_fallthru
          _
        // Predicated region
        $region49: #{tpu_custom_call.1} parent=27 // pred_check
          %p689 = pneg %p160
        $region50: #{tpu_custom_call.1} parent=27 // pred_check_branch
          %691 = sbr.rel (%p689) target = $region52
        $region51: #{tpu_custom_call.1} parent=27 // pred_region
          _
        $region52: #{tpu_custom_call.1} parent=27 // pred_fallthru
          _
      $region28: #{tpu_custom_call.1} parent=5 // pred_fallthru
        _
      %p692 = scmp.le.s32.totalorder 2, %s17
      // Predicated region
      $region53: #{tpu_custom_call.1} parent=5 // pred_check
        %p693 = pneg %p692
      $region54: #{tpu_custom_call.1} parent=5 // pred_check_branch
        %695 = sbr.rel (%p693) target = $region56
      $region55: #{tpu_custom_call.1} parent=5 // pred_region
        %s696 = ssub.s32 %s17, 2
        // Predicated region
        $region57: #{tpu_custom_call.1} parent=55 // pred_check
          %p697 = pneg %p114
        $region58: #{tpu_custom_call.1} parent=55 // pred_check_branch
          %699 = sbr.rel (%p697) target = $region60
        $region59: #{tpu_custom_call.1} parent=55 // pred_region
          %p700 = scmp.lt.s32.totalorder %s28, 1
          %s701 = scalar_select %p700, %s28, 1
          %s702 = smul.addr %s701, 4
          %s703 = scalar_lea.vmem %s2, %s702
        $region60: #{tpu_custom_call.1} parent=55 // pred_fallthru
          _
        // Predicated region
        $region61: #{tpu_custom_call.1} parent=55 // pred_check
          %p704 = pneg %p140
        $region62: #{tpu_custom_call.1} parent=55 // pred_check_branch
          %706 = sbr.rel (%p704) target = $region64
        $region63: #{tpu_custom_call.1} parent=55 // pred_region
          %p707 = scmp.lt.s32.totalorder %s28, 1
          %s708 = scalar_select %p707, %s28, 1
          %s709 = smul.addr %s708, 4
          %s710 = scalar_lea.vmem %s3, %s709
        $region64: #{tpu_custom_call.1} parent=55 // pred_fallthru
          _
        // Predicated region
        $region65: #{tpu_custom_call.1} parent=55 // pred_check
          %p711 = pneg %p166
        $region66: #{tpu_custom_call.1} parent=55 // pred_check_branch
          %713 = sbr.rel (%p711) target = $region68
        $region67: #{tpu_custom_call.1} parent=55 // pred_region
          %p714 = scmp.lt.s32.totalorder %s28, 1
          %s715 = scalar_select %p714, %s28, 1
          %s716 = smul.addr %s715, 4
          %s717 = scalar_lea.vmem %s4, %s716
        $region68: #{tpu_custom_call.1} parent=55 // pred_fallthru
          _
      $region56: #{tpu_custom_call.1} parent=5 // pred_fallthru
        _
    $region6: #{tpu_custom_call.1} parent=1 // loop_footer
      %s21 = sadd.s32 1, %s17
    $region7: #{tpu_custom_call.1} parent=1 // loop_footer_branch
      %16 = sbr.rel target = $region3
    $region8: #{tpu_custom_call.1} parent=1 // loop_exit
      _
    %718 = vsyncpa [#allocation3], 1
    %s719 = scalar_lea.sflag [#allocation3], 1
    %720 = vsyncpa %s719, 1
    %721 = vsyncpa [#allocation5], 1
    %s722 = scalar_lea.sflag [#allocation5], 1
    %723 = vsyncpa %s722, 1

</llo_original>
